<compile_context>
chip_gen: v5e
topology: v5e:2x2
jax: 0.10.0
libtpu: 0.0.40
codegen_flags: <defaults>
</compile_context>

<pallas_src>
import functools
import math

import jax
import jax.numpy as jnp
from jax.experimental import pallas as pl
from jax.experimental.pallas import tpu as pltpu


def _sdpa_kernel(q1_ref, q2_ref, wkv_ref, rbits_ref, o_ref, kv_ref, *,
                 key_size, val_size, inv_scale, dropout_p, keep_threshold,
                 use_approx_recip):
    # ---- fused K/V projection: computed once, cached in VMEM scratch -------
    @pl.when(pl.program_id(0) == 0)
    def _():
        kv = jax.lax.dot_general(
            q2_ref[...], wkv_ref[...],
            dimension_numbers=(((1,), (1,)), ((), ())),   # q2 @ Wkv.T, no .T op
            preferred_element_type=jnp.float32)
        kv_ref[...] = kv.astype(kv_ref.dtype)

    # ---- Q projection for this query tile:  q = q1_tile @ Wk.T -------------
    q = jax.lax.dot_general(
        q1_ref[...], wkv_ref[0:key_size, :],
        dimension_numbers=(((1,), (1,)), ((), ())),
        preferred_element_type=jnp.float32).astype(jnp.bfloat16)

    k = kv_ref[:, 0:key_size]                       # (Sk, key_size) bf16
    v = kv_ref[:, key_size:key_size + val_size]     # (Sk, val_size) bf16

    # ---- scaled scores:  (q @ k.T) / sqrt(key_size) -------------------------
    s = jax.lax.dot_general(
        q, k,
        dimension_numbers=(((1,), (1,)), ((), ())),
        preferred_element_type=jnp.float32) * inv_scale

    # ---- softmax over keys (f32 elementwise) --------------------------------
    m = jnp.max(s, axis=-1, keepdims=True)
    e = jnp.exp(s - m)
    denom = jnp.sum(e, axis=-1, keepdims=True)
    if use_approx_recip:
        p = e * pl.reciprocal(denom, approx=True)   # EUP vrcp on real TPU
    else:
        p = e / denom                               # portable (interpret/CPU)

    # ---- dropout: raw uint32 threshold compare; 1/(1-p) hoisted to output ---
    if dropout_p > 0.0:
        keep = rbits_ref[...] >= jnp.uint32(keep_threshold)
        p = jnp.where(keep, p, 0.0)

    pv = jnp.dot(p.astype(jnp.bfloat16), v, preferred_element_type=jnp.float32)

    if dropout_p > 0.0:
        pv = pv * (1.0 / (1.0 - dropout_p))

    o_ref[...] = pv.astype(o_ref.dtype)


def sdpa_pallas(query1, query2, w_key, w_value, *, dropout_p=0.1, seed=0,
                tq=8):
    """query1: (Sq, query_size), query2: (Sk, query_size),
       w_key: (key_size, query_size), w_value: (val_size, query_size)."""
    sq, dq = query1.shape
    sk = query2.shape[0]
    kd = w_key.shape[0]
    vd = w_value.shape[0]

    # Fused K/V weight (key rows first, then value rows); bf16 MXU operands.
    w_kv = jnp.concatenate([w_key, w_value], axis=0).astype(jnp.bfloat16)
    q1 = query1.astype(jnp.bfloat16)
    q2 = query2.astype(jnp.bfloat16)

    # Pad the query axis to a multiple of the tile size.
    n_tiles = pl.cdiv(sq, tq)
    sq_pad = n_tiles * tq
    if sq_pad != sq:
        q1 = jnp.pad(q1, ((0, sq_pad - sq), (0, 0)))

    # Deterministic dropout bits (per query tile of rows -> distinct masks).
    rbits = jax.random.bits(jax.random.PRNGKey(seed), (sq_pad, sk), jnp.uint32)
    keep_threshold = min(int(round(float(dropout_p) * 2.0 ** 32)), 2 ** 32 - 1)

    use_approx_recip = jax.devices()[0].platform == "tpu"

    kernel = functools.partial(
        _sdpa_kernel,
        key_size=kd, val_size=vd,
        inv_scale=1.0 / math.sqrt(float(kd)),
        dropout_p=float(dropout_p),
        keep_threshold=keep_threshold,
        use_approx_recip=use_approx_recip)

    out = pl.pallas_call(
        kernel,
        out_shape=jax.ShapeDtypeStruct((sq_pad, vd), jnp.float32),
        grid_spec=pltpu.PrefetchScalarGridSpec(
            num_scalar_prefetch=0,
            grid=(n_tiles,),
            in_specs=[
                pl.BlockSpec((tq, dq), lambda i: (i, 0)),        # query1 tile
                pl.BlockSpec((sk, dq), lambda i: (0, 0)),        # query2 (all)
                pl.BlockSpec((kd + vd, dq), lambda i: (0, 0)),   # fused Wkv
                pl.BlockSpec((tq, sk), lambda i: (i, 0)),        # dropout bits
            ],
            out_specs=pl.BlockSpec((tq, vd), lambda i: (i, 0)),
            scratch_shapes=[pltpu.VMEM((sk, kd + vd), jnp.bfloat16)],
        ),
        compiler_params=pltpu.CompilerParams(
            # kv scratch is initialized at program_id==0 and reused, so the
            # query axis must be sequential ("arbitrary").
            dimension_semantics=("arbitrary",),
            vmem_limit_bytes=48 * 1024 * 1024,
        ),
    )(q1, q2, w_kv, rbits)
    return out[:sq]


if __name__ == "__main__":
    # Small, lane-friendly shapes consistent with the module's (·, 128) inputs.
    query_size, key_size, val_size = 128, 128, 128
    sq, sk = 16, 32
    dropout_p = 0.1

    root = jax.random.PRNGKey(0)
    k1, k2, k3, k4 = jax.random.split(root, 4)

    query1 = jax.random.normal(k1, (sq, query_size), dtype=jnp.float32)
    query2 = jax.random.normal(k2, (sk, query_size), dtype=jnp.float32)
    # Deterministic "Linear" weights, PyTorch layout (out_features, in_features).
    bound = 1.0 / math.sqrt(query_size)
    w_key = jax.random.uniform(k3, (key_size, query_size), jnp.float32,
                               minval=-bound, maxval=bound)
    w_value = jax.random.uniform(k4, (val_size, query_size), jnp.float32,
                                 minval=-bound, maxval=bound)

    out = sdpa_pallas(query1, query2, w_key, w_value,
                      dropout_p=dropout_p, seed=0)
    jax.block_until_ready(out)
    assert out.shape == (sq, val_size)
    assert bool(jnp.all(jnp.isfinite(out)))
    print("KERNEL_OK")
</pallas_src>

<mosaic_0001>
module attributes {stable_mosaic.version = 11 : i64} {
  func.func @_sdpa_kernel(%arg0: i32, %arg1: memref<8x128xbf16, #tpu.memory_space<vmem>>, %arg2: memref<32x128xbf16, #tpu.memory_space<vmem>>, %arg3: memref<256x128xbf16, #tpu.memory_space<vmem>>, %arg4: memref<8x32xi32, #tpu.memory_space<vmem>>, %arg5: memref<8x128xf32, #tpu.memory_space<vmem>>, %arg6: memref<32x256xbf16, #tpu.memory_space<vmem>>) attributes {dimension_semantics = [#tpu.dimension_semantics<arbitrary>], iteration_bounds = array<i64: 2>, scalar_prefetch = 0 : i64, scratch_operands = 1 : i64, tpu.core_type = #tpu.core_type<tc>, window_params = [{transform_indices = @transform_0, window_bounds = array<i64: 8, 128>}, {pipeline_mode = #tpu.pipeline_mode<synchronous>, transform_indices = @transform_1, window_bounds = array<i64: 32, 128>}, {pipeline_mode = #tpu.pipeline_mode<synchronous>, transform_indices = @transform_2, window_bounds = array<i64: 256, 128>}, {transform_indices = @transform_3, window_bounds = array<i64: 8, 32>}, {transform_indices = @transform_4, window_bounds = array<i64: 8, 128>}]} {
    %c0_i32 = arith.constant 0 : i32
    %0 = arith.cmpi eq, %arg0, %c0_i32 : i32
    %1 = arith.extui %0 : i1 to i32
    %c0_i32_0 = arith.constant 0 : i32
    %2 = arith.cmpi ne, %1, %c0_i32_0 : i32
    scf.if %2 {
      %c0_18 = arith.constant 0 : index
      %c0_19 = arith.constant 0 : index
      %31 = vector.load %arg2[%c0_18, %c0_19] : memref<32x128xbf16, #tpu.memory_space<vmem>>, vector<32x128xbf16>
      %c0_20 = arith.constant 0 : index
      %c0_21 = arith.constant 0 : index
      %32 = vector.load %arg3[%c0_20, %c0_21] : memref<256x128xbf16, #tpu.memory_space<vmem>>, vector<256x128xbf16>
      %cst_22 = arith.constant dense<0.000000e+00> : vector<32x256xf32>
      %33 = tpu.matmul %31, %32, %cst_22 {dimension_numbers = #tpu.dot_dimension_numbers<[1], [1], [0], [0], [0, 0, 1, 0], [], []>} : vector<32x128xbf16>, vector<256x128xbf16>, vector<32x256xf32> -> vector<32x256xf32>
      %34 = arith.truncf %33 : vector<32x256xf32> to vector<32x256xbf16>
      %c0_23 = arith.constant 0 : index
      %c0_24 = arith.constant 0 : index
      %35 = vector.load %arg6[%c0_23, %c0_24] : memref<32x256xbf16, #tpu.memory_space<vmem>>, vector<32x256xbf16>
      tpu.vector_store %arg6[%c0_23, %c0_24], %34 {strides = array<i32>} : memref<32x256xbf16, #tpu.memory_space<vmem>>, vector<32x256xbf16>,
    } else {
    }
    %c0 = arith.constant 0 : index
    %c0_1 = arith.constant 0 : index
    %3 = vector.load %arg1[%c0, %c0_1] : memref<8x128xbf16, #tpu.memory_space<vmem>>, vector<8x128xbf16>
    %c0_2 = arith.constant 0 : index
    %c0_3 = arith.constant 0 : index
    %4 = vector.load %arg3[%c0_2, %c0_3] : memref<256x128xbf16, #tpu.memory_space<vmem>>, vector<128x128xbf16>
    %cst = arith.constant dense<0.000000e+00> : vector<8x128xf32>
    %5 = tpu.matmul %3, %4, %cst {dimension_numbers = #tpu.dot_dimension_numbers<[1], [1], [0], [0], [0, 0, 1, 0], [], []>} : vector<8x128xbf16>, vector<128x128xbf16>, vector<8x128xf32> -> vector<8x128xf32>
    %6 = arith.truncf %5 : vector<8x128xf32> to vector<8x128xbf16>
    %c0_4 = arith.constant 0 : index
    %c0_5 = arith.constant 0 : index
    %7 = vector.load %arg6[%c0_4, %c0_5] : memref<32x256xbf16, #tpu.memory_space<vmem>>, vector<32x128xbf16>
    %c0_6 = arith.constant 0 : index
    %c128 = arith.constant 128 : index
    %8 = vector.load %arg6[%c0_6, %c128] : memref<32x256xbf16, #tpu.memory_space<vmem>>, vector<32x128xbf16>
    %cst_7 = arith.constant dense<0.000000e+00> : vector<8x32xf32>
    %9 = tpu.matmul %6, %7, %cst_7 {dimension_numbers = #tpu.dot_dimension_numbers<[1], [1], [0], [0], [0, 0, 1, 0], [], []>} : vector<8x128xbf16>, vector<32x128xbf16>, vector<8x32xf32> -> vector<8x32xf32>
    %cst_8 = arith.constant 0.0883883461 : f32
    %10 = vector.broadcast %cst_8 : f32 to vector<8x32xf32>
    %11 = arith.mulf %9, %10 : vector<8x32xf32>
    %cst_9 = arith.constant dense<0xFF800000> : vector<8xf32>
    %12 = vector.multi_reduction <maximumf>, %11, %cst_9 [1] : vector<8x32xf32> to vector<8xf32>
    %13 = vector.shape_cast %12 : vector<8xf32> to vector<8x1xf32>
    %14 = vector.broadcast %13 : vector<8x1xf32> to vector<8x32xf32>
    %15 = arith.subf %11, %14 : vector<8x32xf32>
    %16 = math.exp %15 : vector<8x32xf32>
    %cst_10 = arith.constant dense<0.000000e+00> : vector<8xf32>
    %17 = vector.multi_reduction <add>, %16, %cst_10 [1] : vector<8x32xf32> to vector<8xf32>
    %18 = vector.shape_cast %17 : vector<8xf32> to vector<8x1xf32>
    %19 = vector.broadcast %18 : vector<8x1xf32> to vector<8x32xf32>
    %20 = arith.divf %16, %19 : vector<8x32xf32>
    %c0_11 = arith.constant 0 : index
    %c0_12 = arith.constant 0 : index
    %21 = vector.load %arg4[%c0_11, %c0_12] : memref<8x32xi32, #tpu.memory_space<vmem>>, vector<8x32xi32>
    %c429496730_i32 = arith.constant 429496730 : i32
    %22 = vector.broadcast %c429496730_i32 : i32 to vector<8x32xi32>
    %23 = arith.cmpi uge, %21, %22 : vector<8x32xi32>
    %cst_13 = arith.constant 0.000000e+00 : f32
    %24 = vector.broadcast %cst_13 : f32 to vector<8x32xf32>
    %25 = arith.select %23, %20, %24 : vector<8x32xi1>, vector<8x32xf32>
    %26 = arith.truncf %25 : vector<8x32xf32> to vector<8x32xbf16>
    %cst_14 = arith.constant dense<0.000000e+00> : vector<8x128xf32>
    %27 = tpu.matmul %26, %8, %cst_14 {dimension_numbers = #tpu.dot_dimension_numbers<[1], [0], [0], [1], [0, 0, 1, 1], [], []>} : vector<8x32xbf16>, vector<32x128xbf16>, vector<8x128xf32> -> vector<8x128xf32>
    %cst_15 = arith.constant 1.11111116 : f32
    %28 = vector.broadcast %cst_15 : f32 to vector<8x128xf32>
    %29 = arith.mulf %27, %28 : vector<8x128xf32>
    %c0_16 = arith.constant 0 : index
    %c0_17 = arith.constant 0 : index
    %30 = vector.load %arg5[%c0_16, %c0_17] : memref<8x128xf32, #tpu.memory_space<vmem>>, vector<8x128xf32>
    tpu.vector_store %arg5[%c0_16, %c0_17], %29 {strides = array<i32>} : memref<8x128xf32, #tpu.memory_space<vmem>>, vector<8x128xf32>,
    return
  }
  func.func @transform_0(%arg0: i32) -> (i32, i32) {
    %c0_i32 = arith.constant 0 : i32
    %c0_i32_0 = arith.constant 0 : i32
    return %arg0, %c0_i32 : i32, i32
  }
  func.func @transform_1(%arg0: i32) -> (i32, i32) {
    %c0_i32 = arith.constant 0 : i32
    %c0_i32_0 = arith.constant 0 : i32
    %c0_i32_1 = arith.constant 0 : i32
    return %c0_i32, %c0_i32_0 : i32, i32
  }
  func.func @transform_2(%arg0: i32) -> (i32, i32) {
    %c0_i32 = arith.constant 0 : i32
    %c0_i32_0 = arith.constant 0 : i32
    %c0_i32_1 = arith.constant 0 : i32
    return %c0_i32, %c0_i32_0 : i32, i32
  }
  func.func @transform_3(%arg0: i32) -> (i32, i32) {
    %c0_i32 = arith.constant 0 : i32
    %c0_i32_0 = arith.constant 0 : i32
    return %arg0, %c0_i32 : i32, i32
  }
  func.func @transform_4(%arg0: i32) -> (i32, i32) {
    %c0_i32 = arith.constant 0 : i32
    %c0_i32_0 = arith.constant 0 : i32
    return %arg0, %c0_i32 : i32, i32
  }
}

</mosaic_0001>

<llo_original>
// kernel: tpu_custom_call.1
$region0: #{tpu_custom_call.1}
  #allocation0 [shape = 'u32[]', space=smem, size = 0x4, offset = 0x4, fixed_abs, tag = 'smem constant byte address 0x4 - core index']
  #allocation1 [shape = 'u32[72,128]{1,0:T(1,128)}', space=vmem, size = 0x9000, scoped, tag = 'internal scratch']
  #allocation2 [shape = 'bf16[32,256]{1,0:T(8,128)(2,1)}', space=vmem, size = 0x4000, scoped, tag = 'scratch operand']
  %s0 = inlined_call_operand.hbm [shape: bf16[16,128], index: 0, kind: input, shape index: {}]
  %s1 = inlined_call_operand.hbm [shape: bf16[32,128], index: 1, kind: input, shape index: {}]
  %s2 = inlined_call_operand.hbm [shape: bf16[256,128], index: 2, kind: input, shape index: {}]
  %s3 = inlined_call_operand.hbm [shape: u32[16,32], index: 3, kind: input, shape index: {}]
  %s4 = inlined_call_operand.hbm [shape: f32[16,128], index: 4, kind: output, shape index: {}]
  %s5 = sld [smem:[#allocation0]]
  $region69: #{tpu_custom_call.1} parent=0
    _
  %s7 = ssub.s32 1, %s5
  %s8 = scalar_select 0, %s7, %s5
  $region1: #{tpu_custom_call.1} parent=0
    #allocation3 [shape = 'u8[4096]{0}', space=vmem, size = 0x1000, scoped, tag = 'input window, operand 0']
    #allocation4 [shape = 's32[2]{0}', space=sflag, size = 0x8, scoped, tag = 'scoped memory for tpu_custom_call.1']
    #allocation5 [shape = 's32[2]{0}', space=sflag, size = 0x8, scoped, tag = 'scoped memory for tpu_custom_call.1']
    #allocation6 [shape = 'u8[8192]{0}', space=vmem, size = 0x2000, scoped, tag = 'input window, operand 1, single buffered']
    #allocation7 [shape = 's32[1]{0}', space=sflag, size = 0x4, scoped, tag = 'scoped memory for tpu_custom_call.1']
    #allocation8 [shape = 'u8[65536]{0}', space=vmem, size = 0x10000, scoped, tag = 'input window, operand 2, single buffered']
    #allocation9 [shape = 'u8[8192]{0}', space=vmem, size = 0x2000, scoped, tag = 'input window, operand 3']
    #allocation10 [shape = 's32[2]{0}', space=sflag, size = 0x8, scoped, tag = 'scoped memory for tpu_custom_call.1']
    #allocation11 [shape = 'u8[8192]{0}', space=vmem, size = 0x2000, scoped, tag = 'output window, operand 0']
    %9 = vsyncpa [#allocation4], 0
    %s10 = scalar_lea.sflag [#allocation4], 1
    %11 = vsyncpa %s10, 0
    %12 = vsyncpa [#allocation7], 0
    %13 = vsyncpa [#allocation10], 0
    %s14 = scalar_lea.sflag [#allocation10], 1
    %15 = vsyncpa %s14, 0
    %16 = vsyncpa [#allocation5], 0
    %s17 = scalar_lea.sflag [#allocation5], 1
    %18 = vsyncpa %s17, 0
    loop: start=0, step=1, limit=4
    $region2: #{tpu_custom_call.1} parent=1 // loop_pre_header
      _
    $region3: #{tpu_custom_call.1} parent=1 // loop_header
      %s20 = sphi 0, %s24
      %p21 = scmp.ge.s32.totalorder %s20, 4
      %s30 = sphi 0, %s32
      %s33 = sphi 0, %s30
      %s34 = sphi 0, %s33
      %s50 = sphi 0, %s34
      %s54 = sphi 0, %s54
      %s56 = sphi 0, %s54
      %s57 = sphi 0, %s56
      %s71 = sphi 0, %s57
      %s75 = sphi 0, %s75
      %s77 = sphi 0, %s75
      %s78 = sphi 0, %s77
      %s92 = sphi 0, %s78
      %s98 = sphi 0, %s100
      %s101 = sphi 0, %s98
      %s102 = sphi 0, %s101
      %s118 = sphi 0, %s102
      %s124 = sphi 0, %s126
      %s127 = sphi 0, %s124
      %s128 = sphi 0, %s127
      %s144 = sphi 0, %s128
    $region4: #{tpu_custom_call.1} parent=1 // loop_header_branch
      %23 = sbr.rel (%p21) target = $region8
    $region5: #{tpu_custom_call.1} parent=1 // loop_body
      %s25 = ssub.s32 %s20, 1
      %s26 = ssub.s32 %s20, 2
      %s27 = sadd.s32 %s20, 1
      %s28 = ssub.s32 %s20, %s27
      %p29 = scmp.eq.s32.totalorder %s28, 0
      %s31 = sadd.s32 %s30, 1
      %s32 = scalar_select %p29, %s30, %s31
      %p35 = pneg %p29
      %p36 = scmp.eq.s32.totalorder %s20, 1
      %p37 = por %p35, %p36
      %p38 = scmp.ne.s32.totalorder %s30, %s33
      %p39 = scmp.eq.s32.totalorder %s20, 0
      %p40 = por %p38, %p39
      %p41 = scmp.ne.s32.totalorder %s30, %s33
      %p42 = scmp.eq.s32.totalorder %s25, 1
      %p43 = por %p41, %p42
      %p44 = scmp.ne.s32.totalorder %s33, %s34
      %p45 = scmp.eq.s32.totalorder %s25, 0
      %p46 = por %p44, %p45
      %p47 = scmp.ne.s32.totalorder %s33, %s34
      %p48 = scmp.eq.s32.totalorder %s26, 1
      %p49 = por %p47, %p48
      %p51 = scmp.ne.s32.totalorder %s34, %s50
      %p52 = scmp.eq.s32.totalorder %s26, 0
      %p53 = por %p51, %p52
      %s55 = sadd.s32 %s54, 1
      %p58 = scmp.eq.s32.totalorder %s20, 1
      %p59 = scmp.ne.s32.totalorder %s54, %s56
      %p60 = scmp.eq.s32.totalorder %s20, 0
      %p61 = por %p59, %p60
      %p62 = scmp.ne.s32.totalorder %s54, %s56
      %p63 = scmp.eq.s32.totalorder %s25, 1
      %p64 = por %p62, %p63
      %p65 = scmp.ne.s32.totalorder %s56, %s57
      %p66 = scmp.eq.s32.totalorder %s25, 0
      %p67 = por %p65, %p66
      %p68 = scmp.ne.s32.totalorder %s56, %s57
      %p69 = scmp.eq.s32.totalorder %s26, 1
      %p70 = por %p68, %p69
      %p72 = scmp.ne.s32.totalorder %s57, %s71
      %p73 = scmp.eq.s32.totalorder %s26, 0
      %p74 = por %p72, %p73
      %s76 = sadd.s32 %s75, 1
      %p79 = scmp.eq.s32.totalorder %s20, 1
      %p80 = scmp.ne.s32.totalorder %s75, %s77
      %p81 = scmp.eq.s32.totalorder %s20, 0
      %p82 = por %p80, %p81
      %p83 = scmp.ne.s32.totalorder %s75, %s77
      %p84 = scmp.eq.s32.totalorder %s25, 1
      %p85 = por %p83, %p84
      %p86 = scmp.ne.s32.totalorder %s77, %s78
      %p87 = scmp.eq.s32.totalorder %s25, 0
      %p88 = por %p86, %p87
      %p89 = scmp.ne.s32.totalorder %s77, %s78
      %p90 = scmp.eq.s32.totalorder %s26, 1
      %p91 = por %p89, %p90
      %p93 = scmp.ne.s32.totalorder %s78, %s92
      %p94 = scmp.eq.s32.totalorder %s26, 0
      %p95 = por %p93, %p94
      %s96 = ssub.s32 %s20, %s27
      %p97 = scmp.eq.s32.totalorder %s96, 0
      %s99 = sadd.s32 %s98, 1
      %s100 = scalar_select %p97, %s98, %s99
      %p103 = pneg %p97
      %p104 = scmp.eq.s32.totalorder %s20, 1
      %p105 = por %p103, %p104
      %p106 = scmp.ne.s32.totalorder %s98, %s101
      %p107 = scmp.eq.s32.totalorder %s20, 0
      %p108 = por %p106, %p107
      %p109 = scmp.ne.s32.totalorder %s98, %s101
      %p110 = scmp.eq.s32.totalorder %s25, 1
      %p111 = por %p109, %p110
      %p112 = scmp.ne.s32.totalorder %s101, %s102
      %p113 = scmp.eq.s32.totalorder %s25, 0
      %p114 = por %p112, %p113
      %p115 = scmp.ne.s32.totalorder %s101, %s102
      %p116 = scmp.eq.s32.totalorder %s26, 1
      %p117 = por %p115, %p116
      %p119 = scmp.ne.s32.totalorder %s102, %s118
      %p120 = scmp.eq.s32.totalorder %s26, 0
      %p121 = por %p119, %p120
      %s122 = ssub.s32 %s20, %s27
      %p123 = scmp.eq.s32.totalorder %s122, 0
      %s125 = sadd.s32 %s124, 1
      %s126 = scalar_select %p123, %s124, %s125
      %p129 = pneg %p123
      %p130 = scmp.eq.s32.totalorder %s20, 1
      %p131 = por %p129, %p130
      %p132 = scmp.ne.s32.totalorder %s124, %s127
      %p133 = scmp.eq.s32.totalorder %s20, 0
      %p134 = por %p132, %p133
      %p135 = scmp.ne.s32.totalorder %s124, %s127
      %p136 = scmp.eq.s32.totalorder %s25, 1
      %p137 = por %p135, %p136
      %p138 = scmp.ne.s32.totalorder %s127, %s128
      %p139 = scmp.eq.s32.totalorder %s25, 0
      %p140 = por %p138, %p139
      %p141 = scmp.ne.s32.totalorder %s127, %s128
      %p142 = scmp.eq.s32.totalorder %s26, 1
      %p143 = por %p141, %p142
      %p145 = scmp.ne.s32.totalorder %s128, %s144
      %p146 = scmp.eq.s32.totalorder %s26, 0
      %p147 = por %p145, %p146
      %p148 = scmp.le.s32.totalorder 1, %s20
      %p149 = scmp.lt.s32.totalorder %s20, 3
      %p150 = pnand %p148, %p149
      %p151 = pneg %p150
      // Predicated region
      $region9: #{tpu_custom_call.1} parent=5 // pred_check
        _
      $region10: #{tpu_custom_call.1} parent=5 // pred_check_branch
        %153 = sbr.rel (%p150) target = $region12
      $region11: #{tpu_custom_call.1} parent=5 // pred_region
        %s154 = ssub.s32 %s20, 1
        // Predicated region
        $region13: #{tpu_custom_call.1} parent=11 // pred_check
          %p155 = pneg %p67
        $region14: #{tpu_custom_call.1} parent=11 // pred_check_branch
          %157 = sbr.rel (%p155) target = $region16
        $region15: #{tpu_custom_call.1} parent=11 // pred_region
          %159 = vsyncadd [#allocation7], 0
          %s160 = sshll.u32 %s1, 4
          %s161 = int_to_ptr.hbm [resolvable:$true] %s160
          %s162 = sshll.u32 [#allocation6], 4
          %s163 = int_to_ptr.vmem [resolvable:$true] %s162
          %168 = dma.hbm_to_vmem [thread:$0]  %s161, 256, %s163, [#allocation7], 64, 64, 4
        $region16: #{tpu_custom_call.1} parent=11 // pred_fallthru
          _
        // Predicated region
        $region17: #{tpu_custom_call.1} parent=11 // pred_check
          %p169 = pneg %p88
        $region18: #{tpu_custom_call.1} parent=11 // pred_check_branch
          %171 = sbr.rel (%p169) target = $region20
        $region19: #{tpu_custom_call.1} parent=11 // pred_region
          %173 = vsyncadd [#allocation7], 0
          %s174 = sshll.u32 %s2, 4
          %s175 = int_to_ptr.hbm [resolvable:$true] %s174
          %s176 = sshll.u32 [#allocation8], 4
          %s177 = int_to_ptr.vmem [resolvable:$true] %s176
          %182 = dma.hbm_to_vmem [thread:$0]  %s175, 2048, %s177, [#allocation7], 64, 64, 4
        $region20: #{tpu_custom_call.1} parent=11 // pred_fallthru
          _
      $region12: #{tpu_custom_call.1} parent=5 // pred_fallthru
        _
      %p183 = scmp.lt.s32.totalorder %s20, 2
      // Predicated region
      $region21: #{tpu_custom_call.1} parent=5 // pred_check
        %p184 = pneg %p183
      $region22: #{tpu_custom_call.1} parent=5 // pred_check_branch
        %186 = sbr.rel (%p184) target = $region24
      $region23: #{tpu_custom_call.1} parent=5 // pred_region
        // Predicated region
        $region25: #{tpu_custom_call.1} parent=23 // pred_check
          %p187 = pneg %p40
        $region26: #{tpu_custom_call.1} parent=23 // pred_check_branch
          %189 = sbr.rel (%p187) target = $region28
        $region27: #{tpu_custom_call.1} parent=23 // pred_region
          %s190 = sand.u32 %s30, 1
          %s191 = scalar_lea.sflag [#allocation4], %s190
          %s192 = sand.u32 %s30, 1
          %s193 = smul.addr %s192, 4
          %s194 = scalar_lea.vmem [#allocation3], %s193
          %196 = vsyncadd %s191, 0
          %s197 = smul.addr %s20, 4
          %s198 = scalar_lea.hbm %s0, %s197
          %s200 = sshll.u32 %s198, 4
          %s201 = int_to_ptr.hbm [resolvable:$true] %s200
          %s202 = sshll.u32 %s194, 4
          %s203 = int_to_ptr.vmem [resolvable:$true] %s202
          %205 = dma.hbm_to_vmem [thread:$0]  %s201, 64, %s203, %s191
        $region28: #{tpu_custom_call.1} parent=23 // pred_fallthru
          _
        // Predicated region
        $region29: #{tpu_custom_call.1} parent=23 // pred_check
          %p206 = pneg %p108
        $region30: #{tpu_custom_call.1} parent=23 // pred_check_branch
          %208 = sbr.rel (%p206) target = $region32
        $region31: #{tpu_custom_call.1} parent=23 // pred_region
          %s209 = sand.u32 %s98, 1
          %s210 = scalar_lea.sflag [#allocation10], %s209
          %s211 = sand.u32 %s98, 1
          %s212 = smul.addr %s211, 8
          %s213 = scalar_lea.vmem [#allocation9], %s212
          %215 = vsyncadd %s210, 0
          %s216 = smul.addr %s20, 8
          %s217 = scalar_lea.hbm %s3, %s216
          %s219 = sshll.u32 %s217, 4
          %s220 = int_to_ptr.hbm [resolvable:$true] %s219
          %s221 = sshll.u32 %s213, 4
          %s222 = int_to_ptr.vmem [resolvable:$true] %s221
          %224 = dma.hbm_to_vmem [thread:$0]  %s220, 128, %s222, %s210
        $region32: #{tpu_custom_call.1} parent=23 // pred_fallthru
          _
      $region24: #{tpu_custom_call.1} parent=5 // pred_fallthru
        _
      %p225 = scmp.le.s32.totalorder 1, %s20
      %p226 = scmp.lt.s32.totalorder %s20, 3
      %p227 = pnand %p225, %p226
      %p228 = pneg %p227
      // Predicated region
      $region33: #{tpu_custom_call.1} parent=5 // pred_check
        _
      $region34: #{tpu_custom_call.1} parent=5 // pred_check_branch
        %230 = sbr.rel (%p227) target = $region36
      $region35: #{tpu_custom_call.1} parent=5 // pred_region
        %s231 = ssub.s32 %s20, 1
        %s232 = sand.u32 %s33, 1
        %s233 = scalar_lea.sflag [#allocation4], %s232
        %s234 = sand.u32 %s33, 1
        %s235 = smul.addr %s234, 4
        %s236 = scalar_lea.vmem [#allocation3], %s235
        // Predicated region
        $region37: #{tpu_custom_call.1} parent=35 // pred_check
          %p237 = pneg %p46
        $region38: #{tpu_custom_call.1} parent=35 // pred_check_branch
          %239 = sbr.rel (%p237) target = $region40
        $region39: #{tpu_custom_call.1} parent=35 // pred_region
          %241 = dma.done %s233, 64
        $region40: #{tpu_custom_call.1} parent=35 // pred_fallthru
          _
        // Predicated region
        $region41: #{tpu_custom_call.1} parent=35 // pred_check
          %p242 = pneg %p67
        $region42: #{tpu_custom_call.1} parent=35 // pred_check_branch
          %244 = sbr.rel (%p242) target = $region44
        $region43: #{tpu_custom_call.1} parent=35 // pred_region
          %246 = dma.done [#allocation7], 256
        $region44: #{tpu_custom_call.1} parent=35 // pred_fallthru
          _
        // Predicated region
        $region45: #{tpu_custom_call.1} parent=35 // pred_check
          %p247 = pneg %p88
        $region46: #{tpu_custom_call.1} parent=35 // pred_check_branch
          %249 = sbr.rel (%p247) target = $region48
        $region47: #{tpu_custom_call.1} parent=35 // pred_region
          %251 = dma.done [#allocation7], 2048
        $region48: #{tpu_custom_call.1} parent=35 // pred_fallthru
          _
        %s252 = sand.u32 %s101, 1
        %s253 = scalar_lea.sflag [#allocation10], %s252
        %s254 = sand.u32 %s101, 1
        %s255 = smul.addr %s254, 8
        %s256 = scalar_lea.vmem [#allocation9], %s255
        // Predicated region
        $region49: #{tpu_custom_call.1} parent=35 // pred_check
          %p257 = pneg %p114
        $region50: #{tpu_custom_call.1} parent=35 // pred_check_branch
          %259 = sbr.rel (%p257) target = $region52
        $region51: #{tpu_custom_call.1} parent=35 // pred_region
          %261 = dma.done %s253, 128
        $region52: #{tpu_custom_call.1} parent=35 // pred_fallthru
          _
        %s262 = sand.u32 %s33, 1
        %s263 = scalar_lea.sflag [#allocation4], %s262
        %s264 = sand.u32 %s33, 1
        %s265 = smul.addr %s264, 4
        %s266 = scalar_lea.vmem [#allocation3], %s265
        %p267 = pneg %p46
        %p268 = pneg %p43
        %p269 = pneg %p67
        %p270 = pneg %p64
        %p271 = pneg %p88
        %p272 = pneg %p85
        %s273 = sand.u32 %s101, 1
        %s274 = scalar_lea.sflag [#allocation10], %s273
        %s275 = sand.u32 %s101, 1
        %s276 = smul.addr %s275, 8
        %s277 = scalar_lea.vmem [#allocation9], %s276
        %p278 = pneg %p114
        %p279 = pneg %p111
        %p280 = pneg %p140
        %p281 = pneg %p137
        %s282 = sand.u32 %s127, 1
        %s283 = scalar_lea.sflag [#allocation5], %s282
        %s284 = sand.u32 %s127, 1
        %s285 = smul.addr %s284, 8
        %s286 = scalar_lea.vmem [#allocation11], %s285
        %p288 = scmp.eq.s32.totalorder %s25, 0
        // Predicated region
        $region53: #{tpu_custom_call.1} parent=35 // pred_check
          %p289 = pneg %p288
        $region54: #{tpu_custom_call.1} parent=35 // pred_check_branch
          %291 = sbr.rel (%p289) target = $region56
        $region55: #{tpu_custom_call.1} parent=35 // pred_region
          %v292 = vld [vmem:[#allocation6] sm:$0xf]
          %v293 = vld [vmem:[#allocation6 + $0x4] sm:$0xf]
          %v294 = vld [vmem:[#allocation6 + $0x8] sm:$0xf]
          %v295 = vld [vmem:[#allocation6 + $0xc] sm:$0xf]
          %v296 = vld [vmem:[#allocation8] sm:$0xf]
          %v297 = vld [vmem:[#allocation8 + $0x4] sm:$0xf]
          %v298 = vld [vmem:[#allocation8 + $0x8] sm:$0xf]
          %v299 = vld [vmem:[#allocation8 + $0xc] sm:$0xf]
          %v300 = vld [vmem:[#allocation8 + $0x10] sm:$0xf]
          %v301 = vld [vmem:[#allocation8 + $0x14] sm:$0xf]
          %v302 = vld [vmem:[#allocation8 + $0x18] sm:$0xf]
          %v303 = vld [vmem:[#allocation8 + $0x1c] sm:$0xf]
          %v304 = vld [vmem:[#allocation8 + $0x20] sm:$0xf]
          %v305 = vld [vmem:[#allocation8 + $0x24] sm:$0xf]
          %v306 = vld [vmem:[#allocation8 + $0x28] sm:$0xf]
          %v307 = vld [vmem:[#allocation8 + $0x2c] sm:$0xf]
          %v308 = vld [vmem:[#allocation8 + $0x30] sm:$0xf]
          %v309 = vld [vmem:[#allocation8 + $0x34] sm:$0xf]
          %v310 = vld [vmem:[#allocation8 + $0x38] sm:$0xf]
          %v311 = vld [vmem:[#allocation8 + $0x3c] sm:$0xf]
          %v312 = vld [vmem:[#allocation8 + $0x40] sm:$0xf]
          %v313 = vld [vmem:[#allocation8 + $0x44] sm:$0xf]
          %v314 = vld [vmem:[#allocation8 + $0x48] sm:$0xf]
          %v315 = vld [vmem:[#allocation8 + $0x4c] sm:$0xf]
          %v316 = vld [vmem:[#allocation8 + $0x50] sm:$0xf]
          %v317 = vld [vmem:[#allocation8 + $0x54] sm:$0xf]
          %v318 = vld [vmem:[#allocation8 + $0x58] sm:$0xf]
          %v319 = vld [vmem:[#allocation8 + $0x5c] sm:$0xf]
          %v320 = vld [vmem:[#allocation8 + $0x60] sm:$0xf]
          %v321 = vld [vmem:[#allocation8 + $0x64] sm:$0xf]
          %v322 = vld [vmem:[#allocation8 + $0x68] sm:$0xf]
          %v323 = vld [vmem:[#allocation8 + $0x6c] sm:$0xf]
          %v324 = vld [vmem:[#allocation8 + $0x70] sm:$0xf]
          %v325 = vld [vmem:[#allocation8 + $0x74] sm:$0xf]
          %v326 = vld [vmem:[#allocation8 + $0x78] sm:$0xf]
          %v327 = vld [vmem:[#allocation8 + $0x7c] sm:$0xf]
          %v332 = vunpack.c.l.b16 %v292
          %v333 = vunpack.c.l.b16 %v293
          %v334 = vunpack.c.l.b16 %v294
          %v335 = vunpack.c.l.b16 %v295
          %v336 = vpack.c.b16 %v333, %v332
          %v337 = vpack.c.b16 %v335, %v334
          %v372 = vunpack.c.l.b16 %v296
          %v373 = vunpack.c.l.b16 %v297
          %v374 = vunpack.c.l.b16 %v298
          %v375 = vunpack.c.l.b16 %v299
          %v376 = vunpack.c.l.b16 %v300
          %v377 = vunpack.c.l.b16 %v301
          %v378 = vunpack.c.l.b16 %v302
          %v379 = vunpack.c.l.b16 %v303
          %v380 = vunpack.c.l.b16 %v304
          %v381 = vunpack.c.l.b16 %v305
          %v382 = vunpack.c.l.b16 %v306
          %v383 = vunpack.c.l.b16 %v307
          %v384 = vunpack.c.l.b16 %v308
          %v385 = vunpack.c.l.b16 %v309
          %v386 = vunpack.c.l.b16 %v310
          %v387 = vunpack.c.l.b16 %v311
          %v388 = vunpack.c.l.b16 %v312
          %v389 = vunpack.c.l.b16 %v313
          %v390 = vunpack.c.l.b16 %v314
          %v391 = vunpack.c.l.b16 %v315
          %v392 = vunpack.c.l.b16 %v316
          %v393 = vunpack.c.l.b16 %v317
          %v394 = vunpack.c.l.b16 %v318
          %v395 = vunpack.c.l.b16 %v319
          %v396 = vunpack.c.l.b16 %v320
          %v397 = vunpack.c.l.b16 %v321
          %v398 = vunpack.c.l.b16 %v322
          %v399 = vunpack.c.l.b16 %v323
          %v400 = vunpack.c.l.b16 %v324
          %v401 = vunpack.c.l.b16 %v325
          %v402 = vunpack.c.l.b16 %v326
          %v403 = vunpack.c.l.b16 %v327
          %v404 = vpack.c.b16 %v373, %v372
          %v405 = vpack.c.b16 %v375, %v374
          %v406 = vpack.c.b16 %v377, %v376
          %v407 = vpack.c.b16 %v379, %v378
          %v408 = vpack.c.b16 %v381, %v380
          %v409 = vpack.c.b16 %v383, %v382
          %v410 = vpack.c.b16 %v385, %v384
          %v411 = vpack.c.b16 %v387, %v386
          %v412 = vpack.c.b16 %v389, %v388
          %v413 = vpack.c.b16 %v391, %v390
          %v414 = vpack.c.b16 %v393, %v392
          %v415 = vpack.c.b16 %v395, %v394
          %v416 = vpack.c.b16 %v397, %v396
          %v417 = vpack.c.b16 %v399, %v398
          %v418 = vpack.c.b16 %v401, %v400
          %v419 = vpack.c.b16 %v403, %v402
          %436 = vmatpush.bf16.xpose.msra.mxu0 %v411
          %437 = vmatpush.bf16.xpose.msra.mxu0 %v410
          %438 = vmatpush.bf16.xpose.msra.mxu0 %v409
          %439 = vmatpush.bf16.xpose.msra.mxu0 %v408
          %440 = vmatpush.bf16.xpose.msra.mxu0 %v407
          %441 = vmatpush.bf16.xpose.msra.mxu0 %v406
          %442 = vmatpush.bf16.xpose.msra.mxu0 %v405
          %443 = vmatpush.bf16.xpose.msra.mxu0 %v404
          %444 = vmatmul.bf16.gmra.mxu0 %v336
          %v445 = vpop.f32.mrf.mxu0
          %v446 = vadd.f32 0.0, %v445
          %v447 = vpop.f32.mrf.mxu0
          %v448 = vadd.f32 0.0, %v447
          %449 = vmatmul.bf16.gmra.mxu0 %v337
          %v450 = vpop.f32.mrf.mxu0
          %v451 = vadd.f32 0.0, %v450
          %v452 = vpop.f32.mrf.mxu0
          %v453 = vadd.f32 0.0, %v452
          %454 = vdwg.mxu0
          %455 = vmatpush.bf16.xpose.msra.mxu0 %v419
          %456 = vmatpush.bf16.xpose.msra.mxu0 %v418
          %457 = vmatpush.bf16.xpose.msra.mxu0 %v417
          %458 = vmatpush.bf16.xpose.msra.mxu0 %v416
          %459 = vmatpush.bf16.xpose.msra.mxu0 %v415
          %460 = vmatpush.bf16.xpose.msra.mxu0 %v414
          %461 = vmatpush.bf16.xpose.msra.mxu0 %v413
          %462 = vmatpush.bf16.xpose.msra.mxu0 %v412
          %463 = vmatmul.bf16.gmra.mxu0 %v336
          %v464 = vpop.f32.mrf.mxu0
          %v465 = vadd.f32 0.0, %v464
          %v466 = vpop.f32.mrf.mxu0
          %v467 = vadd.f32 0.0, %v466
          %468 = vmatmul.bf16.gmra.mxu0 %v337
          %v469 = vpop.f32.mrf.mxu0
          %v470 = vadd.f32 0.0, %v469
          %v471 = vpop.f32.mrf.mxu0
          %v472 = vadd.f32 0.0, %v471
          %473 = vdwg.mxu0
          %v474 = vpack.c.bf16 %v465, %v446
          %v475 = vpack.c.bf16 %v467, %v448
          %v476 = vpack.c.bf16 %v470, %v451
          %v477 = vpack.c.bf16 %v472, %v453
          %478 = vst [vmem:[#allocation2] sm:$0xff] %v474
          %479 = vst [vmem:[#allocation2 + $0x8] sm:$0xff] %v475
          %480 = vst [vmem:[#allocation2 + $0x10] sm:$0xff] %v476
          %481 = vst [vmem:[#allocation2 + $0x18] sm:$0xff] %v477
        $region56: #{tpu_custom_call.1} parent=35 // pred_fallthru
          _
        %v482 = vld [vmem:[%s236] sm:$0xf]
        %v483 = vld [vmem:[#allocation8] sm:$0xf]
        %v484 = vld [vmem:[#allocation8 + $0x4] sm:$0xf]
        %v485 = vld [vmem:[#allocation8 + $0x8] sm:$0xf]
        %v486 = vld [vmem:[#allocation8 + $0xc] sm:$0xf]
        %v487 = vld [vmem:[#allocation8 + $0x10] sm:$0xf]
        %v488 = vld [vmem:[#allocation8 + $0x14] sm:$0xf]
        %v489 = vld [vmem:[#allocation8 + $0x18] sm:$0xf]
        %v490 = vld [vmem:[#allocation8 + $0x1c] sm:$0xf]
        %v491 = vld [vmem:[#allocation8 + $0x20] sm:$0xf]
        %v492 = vld [vmem:[#allocation8 + $0x24] sm:$0xf]
        %v493 = vld [vmem:[#allocation8 + $0x28] sm:$0xf]
        %v494 = vld [vmem:[#allocation8 + $0x2c] sm:$0xf]
        %v495 = vld [vmem:[#allocation8 + $0x30] sm:$0xf]
        %v496 = vld [vmem:[#allocation8 + $0x34] sm:$0xf]
        %v497 = vld [vmem:[#allocation8 + $0x38] sm:$0xf]
        %v498 = vld [vmem:[#allocation8 + $0x3c] sm:$0xf]
        %v515 = vunpack.c.l.b16 %v483
        %v516 = vunpack.c.l.b16 %v484
        %v517 = vunpack.c.l.b16 %v485
        %v518 = vunpack.c.l.b16 %v486
        %v519 = vunpack.c.l.b16 %v487
        %v520 = vunpack.c.l.b16 %v488
        %v521 = vunpack.c.l.b16 %v489
        %v522 = vunpack.c.l.b16 %v490
        %v523 = vunpack.c.l.b16 %v491
        %v524 = vunpack.c.l.b16 %v492
        %v525 = vunpack.c.l.b16 %v493
        %v526 = vunpack.c.l.b16 %v494
        %v527 = vunpack.c.l.b16 %v495
        %v528 = vunpack.c.l.b16 %v496
        %v529 = vunpack.c.l.b16 %v497
        %v530 = vunpack.c.l.b16 %v498
        %v531 = vpack.c.b16 %v516, %v515
        %v532 = vpack.c.b16 %v518, %v517
        %v533 = vpack.c.b16 %v520, %v519
        %v534 = vpack.c.b16 %v522, %v521
        %v535 = vpack.c.b16 %v524, %v523
        %v536 = vpack.c.b16 %v526, %v525
        %v537 = vpack.c.b16 %v528, %v527
        %v538 = vpack.c.b16 %v530, %v529
        %547 = vmatpush.bf16.xpose.msra.mxu0 %v538
        %548 = vmatpush.bf16.xpose.msra.mxu0 %v537
        %549 = vmatpush.bf16.xpose.msra.mxu0 %v536
        %550 = vmatpush.bf16.xpose.msra.mxu0 %v535
        %551 = vmatpush.bf16.xpose.msra.mxu0 %v534
        %552 = vmatpush.bf16.xpose.msra.mxu0 %v533
        %553 = vmatpush.bf16.xpose.msra.mxu0 %v532
        %554 = vmatpush.bf16.xpose.msra.mxu0 %v531
        %555 = vmatmul.bf16.gmra.mxu0 %v482
        %v556 = vpop.f32.mrf.mxu0
        %v557 = vadd.f32 0.0, %v556
        %v558 = vpop.f32.mrf.mxu0
        %559 = vdwg.mxu0
        %v560 = vpack.c.bf16 %v557, %v557
        %v561 = vld [vmem:[#allocation2] sm:$0xf]
        %v562 = vld [vmem:[#allocation2 + $0x8] sm:$0xf]
        %v563 = vld [vmem:[#allocation2 + $0x10] sm:$0xf]
        %v564 = vld [vmem:[#allocation2 + $0x18] sm:$0xf]
        %v565 = vld [vmem:[#allocation2 + $0x4] sm:$0xf]
        %v566 = vld [vmem:[#allocation2 + $0xc] sm:$0xf]
        %v567 = vld [vmem:[#allocation2 + $0x14] sm:$0xf]
        %v568 = vld [vmem:[#allocation2 + $0x1c] sm:$0xf]
        %v573 = vunpack.c.l.b16 %v561
        %v574 = vunpack.c.l.b16 %v562
        %v575 = vunpack.c.l.b16 %v563
        %v576 = vunpack.c.l.b16 %v564
        %v577 = vpack.c.b16 %v574, %v573
        %v578 = vpack.c.b16 %v576, %v575
        %581 = vmatpush.bf16.xpose.msra.mxu0 0
        %582 = vmatpush.bf16.xpose.msra.mxu0 0
        %583 = vmatpush.bf16.xpose.msra.mxu0 0
        %584 = vmatpush.bf16.xpose.msra.mxu0 0
        %585 = vmatpush.bf16.xpose.msra.mxu0 0
        %586 = vmatpush.bf16.xpose.msra.mxu0 0
        %587 = vmatpush.bf16.xpose.msra.mxu0 %v578
        %588 = vmatpush.bf16.xpose.msra.mxu0 %v577
        %589 = vmatmul.bf16.gmra.mxu0 %v560
        %v590 = vpop.f32.mrf.mxu0
        %v591 = vadd.f32 0.0, %v590
        %v592 = vpop.f32.mrf.mxu0
        %593 = vdwg.mxu0
        %v594 = vmul.f32 %v591, 0.088388346
        %vm595 = vcmask 261120
        %v596 = vsel %vm595, %v594, -inf
        %597 = vmax.xlane.f32.xlu0 %v596
        %v598 = vpop.xlane.xlu0 %597
        %v599 = vsub.f32 %v594, %v598
        %v600 = vmul.f32 %v599, 1.442695
        %v601 = vpow.pop %v600
        %v602 = vsel %vm595, %v601, 0.0
        %603 = vadd.xlane.f32.xlu0 %v602
        %v604 = vpop.xlane.xlu0 %603
        %v605 = vrcp.pop %v604
        %v606 = vmul.f32 %v604, %v605
        %v607 = vsub.f32 1.0, %v606
        %v608 = vmul.f32 %v605, %v607
        %v609 = vadd.f32 %v605, %v608
        %vm610 = vweird.f32 %v604
        %vm611 = vweird.f32 %v605
        %vm612 = vmor %vm610, %vm611
        %v613 = vsel %vm612, %v605, %v609
        %v614 = vand.u32 2147483647, %v604
        %vm615 = vcmp.eq.f32.partialorder %v614, 8.507059e+37
        %v616 = vand.u32 %v604, 2147483648
        %v617 = vor.u32 1.1754944e-38, %v616
        %v618 = vsel %vm615, %v617, %v613
        %v619 = vmul.f32 %v601, %v618
        %v620 = vld [vmem:[%s256] sm:$0xff]
        %v621 = vadd.s32 %v620, 2147483648
        %vm623 = vcmp.ge.s32.totalorder %v621, 2576980378
        %v624 = vsel %vm623, %v619, 0.0
        %v625 = vpack.c.bf16 %v624, %v624
        %v630 = vunpack.c.l.b16 %v565
        %v631 = vunpack.c.l.b16 %v566
        %v632 = vunpack.c.l.b16 %v567
        %v633 = vunpack.c.l.b16 %v568
        %v634 = vpack.c.b16 %v631, %v630
        %v635 = vpack.c.b16 %v633, %v632
        %v639 = vsel %vm595, %v625, 0
        %641 = vmatpush.bf16.msra.mxu0 0
        %642 = vmatpush.bf16.msra.mxu0 0
        %643 = vmatpush.bf16.msra.mxu0 0
        %644 = vmatpush.bf16.msra.mxu0 0
        %645 = vmatpush.bf16.msra.mxu0 0
        %646 = vmatpush.bf16.msra.mxu0 0
        %647 = vmatpush.bf16.msra.mxu0 %v635
        %648 = vmatpush.bf16.msra.mxu0 %v634
        %649 = vmatmul.bf16.gmra.mxu0 %v639
        %v650 = vpop.f32.mrf.mxu0
        %v651 = vadd.f32 0.0, %v650
        %v652 = vpop.f32.mrf.mxu0
        %653 = vdwg.mxu0
        %v654 = vmul.f32 %v651, 1.1111112
        %655 = vst [vmem:[%s286] sm:$0xff] %v654
        %s656 = sand.u32 %s127, 1
        %s657 = scalar_lea.sflag [#allocation5], %s656
        %s658 = sand.u32 %s127, 1
        %s659 = smul.addr %s658, 8
        %s660 = scalar_lea.vmem [#allocation11], %s659
        // Predicated region
        $region57: #{tpu_custom_call.1} parent=35 // pred_check
          %p661 = pneg %p137
        $region58: #{tpu_custom_call.1} parent=35 // pred_check_branch
          %663 = sbr.rel (%p661) target = $region60
        $region59: #{tpu_custom_call.1} parent=35 // pred_region
          %665 = vsyncadd %s657, 0
          %s666 = smul.addr %s25, 8
          %s667 = scalar_lea.hbm %s4, %s666
          %s669 = sshll.u32 %s660, 4
          %s670 = int_to_ptr.vmem [resolvable:$true] %s669
          %s671 = sshll.u32 %s667, 4
          %s672 = int_to_ptr.hbm [resolvable:$true] %s671
          %674 = dma.vmem_to_hbm [thread:$0]  %s670, 128, %s672, %s657
        $region60: #{tpu_custom_call.1} parent=35 // pred_fallthru
          _
      $region36: #{tpu_custom_call.1} parent=5 // pred_fallthru
        _
      %p675 = scmp.le.s32.totalorder 2, %s20
      // Predicated region
      $region61: #{tpu_custom_call.1} parent=5 // pred_check
        %p676 = pneg %p675
      $region62: #{tpu_custom_call.1} parent=5 // pred_check_branch
        %678 = sbr.rel (%p676) target = $region64
      $region63: #{tpu_custom_call.1} parent=5 // pred_region
        %s679 = ssub.s32 %s20, 2
        // Predicated region
        $region65: #{tpu_custom_call.1} parent=63 // pred_check
          %p680 = pneg %p143
        $region66: #{tpu_custom_call.1} parent=63 // pred_check_branch
          %682 = sbr.rel (%p680) target = $region68
        $region67: #{tpu_custom_call.1} parent=63 // pred_region
          %s683 = sand.u32 %s128, 1
          %s684 = scalar_lea.sflag [#allocation5], %s683
          %s685 = sand.u32 %s128, 1
          %s686 = smul.addr %s685, 8
          %s687 = scalar_lea.vmem [#allocation11], %s686
          %689 = dma.done %s684, 128
        $region68: #{tpu_custom_call.1} parent=63 // pred_fallthru
          _
      $region64: #{tpu_custom_call.1} parent=5 // pred_fallthru
        _
    $region6: #{tpu_custom_call.1} parent=1 // loop_footer
      %s24 = sadd.s32 1, %s20
    $region7: #{tpu_custom_call.1} parent=1 // loop_footer_branch
      %19 = sbr.rel target = $region3
    $region8: #{tpu_custom_call.1} parent=1 // loop_exit
      _
    %690 = vsyncpa [#allocation4], 1
    %s691 = scalar_lea.sflag [#allocation4], 1
    %692 = vsyncpa %s691, 1
    %693 = vsyncpa [#allocation7], 1
    %694 = vsyncpa [#allocation10], 1
    %s695 = scalar_lea.sflag [#allocation10], 1
    %696 = vsyncpa %s695, 1
    %697 = vsyncpa [#allocation5], 1
    %s698 = scalar_lea.sflag [#allocation5], 1
    %699 = vsyncpa %s698, 1

</llo_original>
